<compile_context>
chip_gen: v5e
topology: v5e:2x2
jax: 0.10.0
libtpu: 0.0.40
codegen_flags: <defaults>
</compile_context>

<pallas_src>
import math

import jax
import jax.numpy as jnp
from jax import lax
from jax.experimental import pallas as pl
from jax.experimental.pallas import tpu as pltpu


def _round_up(v, mult):
    return ((v + mult - 1) // mult) * mult


def _cdiv(a, b):
    return -(-a // b)


def _sublane_mult(dtype):
    # 8 for 4-byte, 16 for 2-byte, 32 for 1-byte dtypes (sublane packing).
    return max(8, 32 // dtype.itemsize)


def _balanced_tile(dim, cap, mult):
    """Largest tile <= cap (multiple of `mult`) that splits `dim` with minimal padding."""
    cap = max(mult, (cap // mult) * mult)
    if dim <= cap:
        return _round_up(dim, mult)
    return _round_up(_cdiv(dim, _cdiv(dim, cap)), mult)


def _block_spec(block_shape, index_map, buffer_count=None):
    """BlockSpec with optional N-deep pipelining; falls back if unsupported."""
    if buffer_count is None:
        return pl.BlockSpec(block_shape, index_map)
    try:
        return pl.BlockSpec(block_shape, index_map, pipeline_mode=pl.Buffered(buffer_count))
    except TypeError:  # older JAX without pipeline_mode
        return pl.BlockSpec(block_shape, index_map)


def prepare_mul_linear_weight(weight):
    """One-time (at model load) transform: (N, K) -> (K, N).

    Use with mul_linear(..., weight_transposed=True) so the kernel performs the
    canonical (M, K) x (K, N) MXU contraction.  Do this ONCE per model, never
    per call (it is a full HBM pass over W).
    """
    return jnp.transpose(weight)


def _make_kernel(*, weight_transposed, use_acc_scratch, mxu_dtype):
    if weight_transposed:
        # Canonical (M,K) x (K,N).
        dn = (((1,), (0,)), ((), ()))
    else:
        # Transposed-RHS form: contract lane (K) dim of both operands.
        # Mosaic lowers this to an MXU matmul with a transposed weight push
        # (no per-tile XLU transpose of the (tn, tk) tile).
        dn = (((1,), (1,)), ((), ()))

    def _dot(x_tile, w_tile):
        if mxu_dtype is not None:
            x_tile = x_tile.astype(mxu_dtype)
            w_tile = w_tile.astype(mxu_dtype)
        return lax.dot_general(
            x_tile, w_tile, dimension_numbers=dn,
            preferred_element_type=jnp.float32,
        )

    if use_acc_scratch:
        # Non-f32 output: accumulate in an f32 VMEM scratch, cast at the end.
        def kernel(s_ref, x_ref, w_ref, b_ref, o_ref, acc_ref):
            k = pl.program_id(2)

            @pl.when(k == 0)
            def _():
                acc_ref[...] = jnp.zeros_like(acc_ref)

            # Scale applied to the activation tile: cheap VPU work hidden
            # under the MXU; W stays untouched in HBM.
            acc_ref[...] += _dot(x_ref[...] * s_ref[...], w_ref[...])

            @pl.when(k == pl.num_programs(2) - 1)
            def _():
                o_ref[...] = (acc_ref[...] + b_ref[...]).astype(o_ref.dtype)
    else:
        # f32 output: accumulate directly into the resident output tile.
        def kernel(s_ref, x_ref, w_ref, b_ref, o_ref):
            k = pl.program_id(2)

            @pl.when(k == 0)
            def _():
                o_ref[...] = jnp.broadcast_to(b_ref[...], o_ref.shape).astype(o_ref.dtype)

            o_ref[...] += _dot(x_ref[...] * s_ref[...], w_ref[...])

    return kernel


def mul_linear(x, input_scale, weight, bias=None, *, weight_transposed=False,
               tm_max=512, tn_max=512, tk_max=1024, mxu_dtype=None):
    """Pallas MulLinear forward: (x * input_scale) @ weight.T + bias.

    Args:
      x:            (..., in_features)
      input_scale:  (in_features,)
      weight:       (out_features, in_features)  -- PyTorch layout (default), or
                    (in_features, out_features)  if weight_transposed=True
                    (see prepare_mul_linear_weight).
      bias:         (out_features,) or None.
      mxu_dtype:    optional (e.g. jnp.bfloat16) matmul operand dtype;
                    accumulation stays f32.
    Returns:
      (..., out_features), dtype of x.
    """
    *lead, k = x.shape
    if weight_transposed:
        k_w, n = weight.shape
    else:
        n, k_w = weight.shape
    assert k == k_w, "in_features mismatch"
    m = math.prod(lead) if lead else 1
    out_dtype = x.dtype

    # ---- tile selection ---------------------------------------------------
    sub = _sublane_mult(x.dtype)
    tiny_m = m <= 64                      # decode-like: pure weight streaming
    if tiny_m:
        tk_max = max(tk_max, 2048)        # bigger weight blocks keep DMA saturated

    tm = _balanced_tile(m, tm_max, sub)
    tn = _balanced_tile(n, tn_max, 128)
    tk = _balanced_tile(k, tk_max, 128)

    m_pad = _round_up(m, tm)
    n_pad = _round_up(n, tn)
    k_pad = _round_up(k, tk)
    k_steps = k_pad // tk

    # Deeper weight buffering only pays off when the weight stream has >1 step.
    w_buffers = 3 if (tiny_m and k_steps > 1) else None

    # ---- operand prep (W untouched unless alignment forces a pad) ----------
    x2d = x.reshape(m, k)
    if (m_pad, k_pad) != (m, k):
        x2d = jnp.pad(x2d, ((0, m_pad - m), (0, k_pad - k)))

    w = weight
    if weight_transposed:
        if (k_pad, n_pad) != (k, n):
            w = jnp.pad(w, ((0, k_pad - k), (0, n_pad - n)))
        w_block, w_index = (tk, tn), (lambda i, j, kk: (kk, j))
    else:
        if (n_pad, k_pad) != (n, k):
            w = jnp.pad(w, ((0, n_pad - n), (0, k_pad - k)))
        w_block, w_index = (tn, tk), (lambda i, j, kk: (j, kk))

    if bias is None:
        b2d = jnp.zeros((1, n_pad), dtype=jnp.float32)
    else:
        b2d = bias.reshape(1, n).astype(jnp.float32)
        if n_pad != n:
            b2d = jnp.pad(b2d, ((0, 0), (0, n_pad - n)))

    s2d = input_scale.reshape(1, k).astype(x.dtype)
    if k_pad != k:
        s2d = jnp.pad(s2d, ((0, 0), (0, k_pad - k)))

    # ---- kernel / specs -----------------------------------------------------
    use_acc_scratch = out_dtype != jnp.float32
    kernel = _make_kernel(weight_transposed=weight_transposed,
                          use_acc_scratch=use_acc_scratch,
                          mxu_dtype=mxu_dtype)

    grid = (m_pad // tm, n_pad // tn, k_steps)

    in_specs = [
        pl.BlockSpec((1, tk), lambda i, j, kk: (0, kk)),    # input_scale
        pl.BlockSpec((tm, tk), lambda i, j, kk: (i, kk)),   # X
        _block_spec(w_block, w_index, w_buffers),           # W (layout as given)
        pl.BlockSpec((1, tn), lambda i, j, kk: (0, j)),     # bias
    ]
    out_spec = pl.BlockSpec((tm, tn), lambda i, j, kk: (i, j))
    scratch = [pltpu.VMEM((tm, tn), jnp.float32)] if use_acc_scratch else []

    # ---- VMEM budget & cost estimate ---------------------------------------
    vmem_bytes = (2 * tm * tk * x2d.dtype.itemsize                 # X double-buffer
                  + (w_buffers or 2) * tn * tk * w.dtype.itemsize  # W buffers
                  + 2 * tk * s2d.dtype.itemsize                    # scale
                  + 2 * tn * 4                                     # bias
                  + 2 * tm * tn * out_dtype.itemsize               # output
                  + (tm * tn * 4 if use_acc_scratch else 0))       # accumulator
    vmem_limit = int(min(max(32 << 20, vmem_bytes + (16 << 20)), 60 << 20))

    cost = pl.CostEstimate(
        flops=2 * m_pad * n_pad * k_pad,
        transcendentals=0,
        bytes_accessed=(x2d.size * x2d.dtype.itemsize
                        + w.size * w.dtype.itemsize
                        + s2d.size * s2d.dtype.itemsize
                        + b2d.size * b2d.dtype.itemsize
                        + m_pad * n_pad * out_dtype.itemsize),
    )

    out2d = pl.pallas_call(
        kernel,
        out_shape=jax.ShapeDtypeStruct((m_pad, n_pad), out_dtype),
        grid_spec=pltpu.PrefetchScalarGridSpec(
            num_scalar_prefetch=0,
            grid=grid,
            in_specs=in_specs,
            out_specs=out_spec,
            scratch_shapes=scratch,
        ),
        compiler_params=pltpu.CompilerParams(
            dimension_semantics=("parallel", "parallel", "arbitrary"),
            vmem_limit_bytes=vmem_limit,
        ),
        cost_estimate=cost,
    )(s2d, x2d, w, b2d)

    return out2d[:m, :n].reshape(*lead, n)


if __name__ == "__main__":
    key = jax.random.PRNGKey(0)
    kx, ks, kw, kb = jax.random.split(key, 4)

    batch, seq, in_features, out_features = 2, 8, 32, 16

    x = jax.random.normal(kx, (batch, seq, in_features), dtype=jnp.float32)
    input_scale = jax.random.uniform(
        ks, (in_features,), jnp.float32, minval=0.5, maxval=1.5)
    bound = 1.0 / math.sqrt(in_features)
    weight = jax.random.uniform(
        kw, (out_features, in_features), jnp.float32, minval=-bound, maxval=bound)
    bias = jax.random.uniform(
        kb, (out_features,), jnp.float32, minval=-bound, maxval=bound)

    # Pure-JAX reference (matches the torch module semantics).
    ref = (x * input_scale) @ weight.T + bias

    # Default path: weight stays in PyTorch (N, K) layout, untouched in HBM.
    out = mul_linear(x, input_scale, weight, bias)
    jax.block_until_ready(out)
    assert out.shape == (batch, seq, out_features)
    assert jnp.allclose(out, ref, atol=1e-4, rtol=1e-4), "mismatch (default path)"

    # "Prepared" path: weight transposed ONCE at load -> canonical MXU matmul.
    w_t = prepare_mul_linear_weight(weight)
    out_t = mul_linear(x, input_scale, w_t, bias, weight_transposed=True)
    jax.block_until_ready(out_t)
    assert jnp.allclose(out_t, ref, atol=1e-4, rtol=1e-4), "mismatch (transposed path)"

    print("KERNEL_OK")
</pallas_src>

<mosaic_0001>
module attributes {stable_mosaic.version = 11 : i64} {
  func.func @kernel(%arg0: i32, %arg1: i32, %arg2: i32, %arg3: memref<1x128xf32, #tpu.memory_space<vmem>>, %arg4: memref<16x128xf32, #tpu.memory_space<vmem>>, %arg5: memref<128x128xf32, #tpu.memory_space<vmem>>, %arg6: memref<1x128xf32, #tpu.memory_space<vmem>>, %arg7: memref<16x128xf32, #tpu.memory_space<vmem>>) attributes {dimension_semantics = [#tpu.dimension_semantics<parallel>, #tpu.dimension_semantics<parallel>, #tpu.dimension_semantics<arbitrary>], iteration_bounds = array<i64: 1, 1, 1>, scalar_prefetch = 0 : i64, scratch_operands = 0 : i64, tpu.core_type = #tpu.core_type<tc>, window_params = [{transform_indices = @transform_0, window_bounds = array<i64: 1, 128>}, {transform_indices = @transform_1, window_bounds = array<i64: 16, 128>}, {transform_indices = @transform_2, window_bounds = array<i64: 128, 128>}, {transform_indices = @transform_3, window_bounds = array<i64: 1, 128>}, {transform_indices = @transform_4, window_bounds = array<i64: 16, 128>}]} {
    %c0_i32 = arith.constant 0 : i32
    %0 = arith.cmpi eq, %arg2, %c0_i32 : i32
    %1 = arith.extui %0 : i1 to i32
    %c0_i32_0 = arith.constant 0 : i32
    %2 = arith.cmpi ne, %1, %c0_i32_0 : i32
    scf.if %2 {
      %c0_10 = arith.constant 0 : index
      %c0_11 = arith.constant 0 : index
      %12 = vector.load %arg6[%c0_10, %c0_11] : memref<1x128xf32, #tpu.memory_space<vmem>>, vector<1x128xf32>
      %13 = vector.shape_cast %12 : vector<1x128xf32> to vector<1x128xf32>
      %14 = vector.broadcast %13 : vector<1x128xf32> to vector<16x128xf32>
      %c0_12 = arith.constant 0 : index
      %c0_13 = arith.constant 0 : index
      %15 = vector.load %arg7[%c0_12, %c0_13] : memref<16x128xf32, #tpu.memory_space<vmem>>, vector<16x128xf32>
      tpu.vector_store %arg7[%c0_12, %c0_13], %14 {strides = array<i32>} : memref<16x128xf32, #tpu.memory_space<vmem>>, vector<16x128xf32>,
    } else {
    }
    %c0 = arith.constant 0 : index
    %c0_1 = arith.constant 0 : index
    %3 = vector.load %arg7[%c0, %c0_1] : memref<16x128xf32, #tpu.memory_space<vmem>>, vector<16x128xf32>
    %c0_2 = arith.constant 0 : index
    %c0_3 = arith.constant 0 : index
    %4 = vector.load %arg4[%c0_2, %c0_3] : memref<16x128xf32, #tpu.memory_space<vmem>>, vector<16x128xf32>
    %c0_4 = arith.constant 0 : index
    %c0_5 = arith.constant 0 : index
    %5 = vector.load %arg3[%c0_4, %c0_5] : memref<1x128xf32, #tpu.memory_space<vmem>>, vector<1x128xf32>
    %6 = vector.broadcast %5 : vector<1x128xf32> to vector<16x128xf32>
    %7 = arith.mulf %4, %6 : vector<16x128xf32>
    %c0_6 = arith.constant 0 : index
    %c0_7 = arith.constant 0 : index
    %8 = vector.load %arg5[%c0_6, %c0_7] : memref<128x128xf32, #tpu.memory_space<vmem>>, vector<128x128xf32>
    %cst = arith.constant dense<0.000000e+00> : vector<16x128xf32>
    %9 = tpu.matmul %7, %8, %cst {dimension_numbers = #tpu.dot_dimension_numbers<[1], [1], [0], [0], [0, 0, 1, 0], [], []>} : vector<16x128xf32>, vector<128x128xf32>, vector<16x128xf32> -> vector<16x128xf32>
    %10 = arith.addf %3, %9 : vector<16x128xf32>
    %c0_8 = arith.constant 0 : index
    %c0_9 = arith.constant 0 : index
    %11 = vector.load %arg7[%c0_8, %c0_9] : memref<16x128xf32, #tpu.memory_space<vmem>>, vector<16x128xf32>
    tpu.vector_store %arg7[%c0_8, %c0_9], %10 {strides = array<i32>} : memref<16x128xf32, #tpu.memory_space<vmem>>, vector<16x128xf32>,
    return
  }
  func.func @transform_0(%arg0: i32, %arg1: i32, %arg2: i32) -> (i32, i32) {
    %c0_i32 = arith.constant 0 : i32
    %c0_i32_0 = arith.constant 0 : i32
    return %c0_i32, %arg2 : i32, i32
  }
  func.func @transform_1(%arg0: i32, %arg1: i32, %arg2: i32) -> (i32, i32) {
    %c0_i32 = arith.constant 0 : i32
    return %arg0, %arg2 : i32, i32
  }
  func.func @transform_2(%arg0: i32, %arg1: i32, %arg2: i32) -> (i32, i32) {
    %c0_i32 = arith.constant 0 : i32
    return %arg1, %arg2 : i32, i32
  }
  func.func @transform_3(%arg0: i32, %arg1: i32, %arg2: i32) -> (i32, i32) {
    %c0_i32 = arith.constant 0 : i32
    %c0_i32_0 = arith.constant 0 : i32
    return %c0_i32, %arg1 : i32, i32
  }
  func.func @transform_4(%arg0: i32, %arg1: i32, %arg2: i32) -> (i32, i32) {
    %c0_i32 = arith.constant 0 : i32
    return %arg0, %arg1 : i32, i32
  }
}

</mosaic_0001>

<llo_original>
// kernel: tpu_custom_call.1
$region0: #{tpu_custom_call.1}
  #allocation0 [shape = 'u32[]', space=smem, size = 0x4, offset = 0x4, fixed_abs, tag = 'smem constant byte address 0x4 - core index']
  #allocation1 [shape = 'u32[72,128]{1,0:T(1,128)}', space=vmem, size = 0x9000, scoped, tag = 'internal scratch']
  %s0 = inlined_call_operand.hbm [shape: f32[1,128], index: 0, kind: input, shape index: {}]
  %s1 = inlined_call_operand.hbm [shape: f32[16,128], index: 1, kind: input, shape index: {}]
  %s2 = inlined_call_operand.hbm [shape: f32[128,128], index: 2, kind: input, shape index: {}]
  %s3 = inlined_call_operand.vmem [shape: f32[1,128], index: 3, kind: input, shape index: {}]
  %s4 = inlined_call_operand.hbm [shape: f32[16,128], index: 4, kind: output, shape index: {}]
  %s5 = sld [smem:[#allocation0]]
  $region42: #{tpu_custom_call.1} parent=0
    _
  %s7 = ssub.s32 1, %s5
  %s8 = scalar_select 0, %s7, %s5
  $region1: #{tpu_custom_call.1} parent=0
    #allocation2 [shape = 'u8[512]{0}', space=vmem, size = 0x400, scoped, tag = 'input window, operand 0, single buffered']
    #allocation3 [shape = 's32[1]{0}', space=sflag, size = 0x4, scoped, tag = 'scoped memory for tpu_custom_call.1']
    #allocation4 [shape = 's32[1]{0}', space=sflag, size = 0x4, scoped, tag = 'scoped memory for tpu_custom_call.1']
    #allocation5 [shape = 'u8[8192]{0}', space=vmem, size = 0x2000, scoped, tag = 'input window, operand 1, single buffered']
    #allocation6 [shape = 's32[1]{0}', space=sflag, size = 0x4, scoped, tag = 'scoped memory for tpu_custom_call.1']
    #allocation7 [shape = 'u8[65536]{0}', space=vmem, size = 0x10000, scoped, tag = 'input window, operand 2, single buffered']
    #allocation8 [shape = 'u8[8192]{0}', space=vmem, size = 0x2000, scoped, tag = 'output window, operand 0, single buffered']
    %9 = vsyncpa [#allocation3], 0
    %10 = vsyncpa [#allocation6], 0
    %11 = vsyncpa [#allocation4], 0
    // Predicated region
    $region2: #{tpu_custom_call.1} parent=1 // pred_check
      _
    $region3: #{tpu_custom_call.1} parent=1 // pred_check_branch
      %13 = sbr.rel (0) target = $region5
    $region4: #{tpu_custom_call.1} parent=1 // pred_region
      %15 = vsyncadd [#allocation3], 0
      %s17 = sshll.u32 %s0, 4
      %s18 = int_to_ptr.hbm [resolvable:$true] %s17
      %s19 = sshll.u32 [#allocation2], 4
      %s20 = int_to_ptr.vmem [resolvable:$true] %s19
      %22 = dma.hbm_to_vmem [thread:$0]  %s18, 16, %s20, [#allocation3]
    $region5: #{tpu_custom_call.1} parent=1 // pred_fallthru
      _
    // Predicated region
    $region6: #{tpu_custom_call.1} parent=1 // pred_check
      _
    $region7: #{tpu_custom_call.1} parent=1 // pred_check_branch
      %24 = sbr.rel (0) target = $region9
    $region8: #{tpu_custom_call.1} parent=1 // pred_region
      %26 = vsyncadd [#allocation6], 0
      %s27 = sshll.u32 %s1, 4
      %s28 = int_to_ptr.hbm [resolvable:$true] %s27
      %s29 = sshll.u32 [#allocation5], 4
      %s30 = int_to_ptr.vmem [resolvable:$true] %s29
      %35 = dma.hbm_to_vmem [thread:$0]  %s28, 256, %s30, [#allocation6], 128, 128, 8
    $region9: #{tpu_custom_call.1} parent=1 // pred_fallthru
      _
    // Predicated region
    $region10: #{tpu_custom_call.1} parent=1 // pred_check
      _
    $region11: #{tpu_custom_call.1} parent=1 // pred_check_branch
      %37 = sbr.rel (0) target = $region13
    $region12: #{tpu_custom_call.1} parent=1 // pred_region
      %39 = vsyncadd [#allocation6], 0
      %s40 = sshll.u32 %s2, 4
      %s41 = int_to_ptr.hbm [resolvable:$true] %s40
      %s42 = sshll.u32 [#allocation7], 4
      %s43 = int_to_ptr.vmem [resolvable:$true] %s42
      %48 = dma.hbm_to_vmem [thread:$0]  %s41, 2048, %s43, [#allocation6], 128, 128, 8
    $region13: #{tpu_custom_call.1} parent=1 // pred_fallthru
      _
    // Predicated region
    $region14: #{tpu_custom_call.1} parent=1 // pred_check
      _
    $region15: #{tpu_custom_call.1} parent=1 // pred_check_branch
      %50 = sbr.rel (0) target = $region17
    $region16: #{tpu_custom_call.1} parent=1 // pred_region
      _
    $region17: #{tpu_custom_call.1} parent=1 // pred_fallthru
      _
    // Predicated region
    $region18: #{tpu_custom_call.1} parent=1 // pred_check
      _
    $region19: #{tpu_custom_call.1} parent=1 // pred_check_branch
      %52 = sbr.rel (0) target = $region21
    $region20: #{tpu_custom_call.1} parent=1 // pred_region
      %54 = dma.done [#allocation3], 16
    $region21: #{tpu_custom_call.1} parent=1 // pred_fallthru
      _
    // Predicated region
    $region22: #{tpu_custom_call.1} parent=1 // pred_check
      _
    $region23: #{tpu_custom_call.1} parent=1 // pred_check_branch
      %56 = sbr.rel (0) target = $region25
    $region24: #{tpu_custom_call.1} parent=1 // pred_region
      %58 = dma.done [#allocation6], 256
    $region25: #{tpu_custom_call.1} parent=1 // pred_fallthru
      _
    // Predicated region
    $region26: #{tpu_custom_call.1} parent=1 // pred_check
      _
    $region27: #{tpu_custom_call.1} parent=1 // pred_check_branch
      %60 = sbr.rel (0) target = $region29
    $region28: #{tpu_custom_call.1} parent=1 // pred_region
      %62 = dma.done [#allocation6], 2048
    $region29: #{tpu_custom_call.1} parent=1 // pred_fallthru
      _
    %p63 = scmp.eq.s32.totalorder 0, 0
    // Predicated region
    $region30: #{tpu_custom_call.1} parent=1 // pred_check
      %p64 = pneg %p63
    $region31: #{tpu_custom_call.1} parent=1 // pred_check_branch
      %66 = sbr.rel (%p64) target = $region33
    $region32: #{tpu_custom_call.1} parent=1 // pred_region
      %v67 = vld [vmem:[%s3] sm:$0x1]
      %v69 = vperm.slane %v67, 0
      %71 = vst [vmem:[#allocation8] sm:$0xff] %v69
      %72 = vst [vmem:[#allocation8 + $0x8] sm:$0xff] %v69
    $region33: #{tpu_custom_call.1} parent=1 // pred_fallthru
      _
    %v73 = vld [vmem:[#allocation8] sm:$0xff]
    %v74 = vld [vmem:[#allocation8 + $0x8] sm:$0xff]
    %v75 = vld [vmem:[#allocation5] sm:$0xff]
    %v76 = vld [vmem:[#allocation5 + $0x8] sm:$0xff]
    %v77 = vld [vmem:[#allocation2] sm:$0x1]
    %v79 = vperm.slane %v77, 0
    %v81 = vmul.f32 %v75, %v79
    %v82 = vmul.f32 %v76, %v79
    %v83 = vld [vmem:[#allocation7] sm:$0xff]
    %v84 = vld [vmem:[#allocation7 + $0x8] sm:$0xff]
    %v85 = vld [vmem:[#allocation7 + $0x10] sm:$0xff]
    %v86 = vld [vmem:[#allocation7 + $0x18] sm:$0xff]
    %v87 = vld [vmem:[#allocation7 + $0x20] sm:$0xff]
    %v88 = vld [vmem:[#allocation7 + $0x28] sm:$0xff]
    %v89 = vld [vmem:[#allocation7 + $0x30] sm:$0xff]
    %v90 = vld [vmem:[#allocation7 + $0x38] sm:$0xff]
    %v91 = vld [vmem:[#allocation7 + $0x40] sm:$0xff]
    %v92 = vld [vmem:[#allocation7 + $0x48] sm:$0xff]
    %v93 = vld [vmem:[#allocation7 + $0x50] sm:$0xff]
    %v94 = vld [vmem:[#allocation7 + $0x58] sm:$0xff]
    %v95 = vld [vmem:[#allocation7 + $0x60] sm:$0xff]
    %v96 = vld [vmem:[#allocation7 + $0x68] sm:$0xff]
    %v97 = vld [vmem:[#allocation7 + $0x70] sm:$0xff]
    %v98 = vld [vmem:[#allocation7 + $0x78] sm:$0xff]
    %99 = vmatpush.xpose.msra.mxu0 %v98
    %100 = vmatpush.xpose.msra.mxu0 %v97
    %101 = vmatpush.xpose.msra.mxu0 %v96
    %102 = vmatpush.xpose.msra.mxu0 %v95
    %103 = vmatpush.xpose.msra.mxu0 %v94
    %104 = vmatpush.xpose.msra.mxu0 %v93
    %105 = vmatpush.xpose.msra.mxu0 %v92
    %106 = vmatpush.xpose.msra.mxu0 %v91
    %107 = vmatpush.xpose.msra.mxu0 %v90
    %108 = vmatpush.xpose.msra.mxu0 %v89
    %109 = vmatpush.xpose.msra.mxu0 %v88
    %110 = vmatpush.xpose.msra.mxu0 %v87
    %111 = vmatpush.xpose.msra.mxu0 %v86
    %112 = vmatpush.xpose.msra.mxu0 %v85
    %113 = vmatpush.xpose.msra.mxu0 %v84
    %114 = vmatpush.xpose.msra.mxu0 %v83
    %115 = vmatmul.f32.gmra.mxu0 %v81
    %v116 = vpop.f32.mrf.mxu0
    %v117 = vadd.f32 0.0, %v116
    %118 = vmatmul.f32.gmra.mxu0 %v82
    %v119 = vpop.f32.mrf.mxu0
    %v120 = vadd.f32 0.0, %v119
    %121 = vdwg.mxu0
    %v122 = vadd.f32 %v73, %v117
    %v123 = vadd.f32 %v74, %v120
    %124 = vst [vmem:[#allocation8] sm:$0xff] %v122
    %125 = vst [vmem:[#allocation8 + $0x8] sm:$0xff] %v123
    // Predicated region
    $region34: #{tpu_custom_call.1} parent=1 // pred_check
      _
    $region35: #{tpu_custom_call.1} parent=1 // pred_check_branch
      %127 = sbr.rel (0) target = $region37
    $region36: #{tpu_custom_call.1} parent=1 // pred_region
      %129 = vsyncadd [#allocation4], 0
      %s130 = sshll.u32 [#allocation8], 4
      %s131 = int_to_ptr.vmem [resolvable:$true] %s130
      %s132 = sshll.u32 %s4, 4
      %s133 = int_to_ptr.hbm [resolvable:$true] %s132
      %138 = dma.vmem_to_hbm [thread:$0]  %s131, 256, %s133, [#allocation4], 128, 128, 8
    $region37: #{tpu_custom_call.1} parent=1 // pred_fallthru
      _
    // Predicated region
    $region38: #{tpu_custom_call.1} parent=1 // pred_check
      _
    $region39: #{tpu_custom_call.1} parent=1 // pred_check_branch
      %140 = sbr.rel (0) target = $region41
    $region40: #{tpu_custom_call.1} parent=1 // pred_region
      %142 = dma.done [#allocation4], 256
    $region41: #{tpu_custom_call.1} parent=1 // pred_fallthru
      _
    %143 = vsyncpa [#allocation3], 1
    %144 = vsyncpa [#allocation6], 1
    %145 = vsyncpa [#allocation4], 1

</llo_original>
